<compile_context>
chip_gen: v5e
topology: v5e:2x2
jax: 0.10.0
libtpu: 0.0.40
codegen_flags: <defaults>
</compile_context>

<pallas_src>
import functools

import jax
import jax.numpy as jnp
from jax.experimental import pallas as pl
from jax.experimental.pallas import tpu as pltpu


def _mrf_potential_lse_kernel(S, R, mol_ref, w_mol_ref, b_mol_ref,
                              w1_ref, b1_ref, w2_ref, b2_ref, o_ref):
    """Single invocation over all R reactions (rows stacked row-major).

    mol_ref : (R*2S, D) bf16  building-block features (both halves per rxn)
    w_mol   : (D, H)    bf16  mol_layer.weight.T
    b_mol   : (1, H)    f32   mol_layer.bias
    w1      : (H, H)    bf16  layer1.weight.T[:H]  (mol half only)
    b1      : (1, H)    f32   layer1.bias + relu(rxn_emb[0]) @ layer1.weight.T[H:]
    w2      : (1, H)    f32   layer2.weight / bb_sample_size
    b2      : (1, 1)    f32   2 * layer2.bias / bb_sample_size   (SMEM scalar)
    o_ref   : (1, R)    f32   unnormalized log p(rxt), written once
    """
    mol = mol_ref[...]

    mol_feat = jnp.maximum(
        jnp.dot(mol, w_mol_ref[...], preferred_element_type=jnp.float32)
        + b_mol_ref[...], 0.0)                                  # (R*2S, H) f32

    h = jnp.maximum(
        jnp.dot(mol_feat.astype(jnp.bfloat16), w1_ref[...],
                preferred_element_type=jnp.float32)
        + b1_ref[...], 0.0)                                     # (R*2S, H) f32

    # layer2 (out_features == 1), 1/S already folded into w2.
    pot = jnp.sum(h * w2_ref[...], axis=1, keepdims=True)       # (R*2S, 1) f32
    b2c = b2_ref[0, 0]                                          # 2*b2/S scalar

    def lse(v):                                                 # v: (S, 1)
        m = jnp.max(v, axis=0, keepdims=True)
        return m + jnp.log(jnp.sum(jnp.exp(v - m), axis=0, keepdims=True))

    # Segmented LSE over consecutive S-row halves; build the (1, R) result with
    # lane selects (robust lowering, single lane-dense store at the end).
    col = jax.lax.broadcasted_iota(jnp.int32, (1, R), 1)
    out = jnp.zeros((1, R), jnp.float32)
    for r in range(R):                       # unrolled: R is small and static
        base = 2 * S * r
        lp = (lse(pot[base:base + S, :])
              + lse(pot[base + S:base + 2 * S, :]) + b2c)        # (1, 1)
        out = jnp.where(col == r, lp, out)
    o_ref[...] = out                                             # one store


def mrf_log_p_rxt(mol_flat, params, num_rxts, bb_sample_size):
    """mol_flat: (R*2S, D) bf16  ->  (R,) unnormalized log p_rxt."""
    kernel = functools.partial(_mrf_potential_lse_kernel,
                               bb_sample_size, num_rxts)
    vmem = pl.BlockSpec(memory_space=pltpu.MemorySpace.VMEM)
    smem = pl.BlockSpec(memory_space=pltpu.MemorySpace.SMEM)
    out = pl.pallas_call(
        kernel,
        out_shape=jax.ShapeDtypeStruct((1, num_rxts), jnp.float32),
        in_specs=[vmem, vmem, vmem, vmem, vmem, vmem, smem],
        out_specs=vmem,
    )(mol_flat, params["w_mol"], params["b_mol"], params["w1_top"],
      params["b1_eff"], params["w2t_s"], params["b2c"])
    return out.reshape(num_rxts)


def init_params(key, mol_feat_dim, hidden_size, bb_sample_size):
    """PyTorch-default-like init, with the constant folds precomputed."""
    ks = jax.random.split(key, 7)

    def lin(kw, kb, fan_in, fan_out):
        bound = 1.0 / jnp.sqrt(jnp.float32(fan_in))
        w = jax.random.uniform(kw, (fan_in, fan_out), jnp.float32, -bound, bound)
        b = jax.random.uniform(kb, (1, fan_out), jnp.float32, -bound, bound)
        return w, b

    H = hidden_size
    w_mol, b_mol = lin(ks[0], ks[1], mol_feat_dim, H)
    rxn_emb = jax.random.normal(ks[2], (1, H), jnp.float32)     # Embedding(1, H)
    w1, b1 = lin(ks[3], ks[4], 2 * H, H)
    w2, b2 = lin(ks[5], ks[6], H, 1)

    # Fold constant reaction branch into layer1 bias; fold 1/S into layer2
    # weight; 2*b2/S becomes a scalar added after the two logsumexps.
    rxn_feat = jnp.maximum(rxn_emb, 0.0)
    b1_eff = b1 + rxn_feat @ w1[H:, :]
    return {
        "w_mol": w_mol.astype(jnp.bfloat16),
        "b_mol": b_mol,
        "w1_top": w1[:H, :].astype(jnp.bfloat16),
        "b1_eff": b1_eff,
        "w2t_s": (w2.T / bb_sample_size).astype(jnp.float32),
        "b2c": jnp.reshape(2.0 * b2 / bb_sample_size, (1, 1)),
    }


def _subsample_cut(key, bb_padded, n_valid, S, D):
    """torch.randperm(n)[:S] row pick + cat of the two feature halves, on a
    padded table (uniform without replacement among the first n_valid rows)."""
    n_max = bb_padded.shape[0]
    scores = jax.random.uniform(key, (n_max,))
    scores = jnp.where(jnp.arange(n_max) < n_valid, scores, jnp.inf)
    idx = jnp.argsort(scores)[:S]                                # S valid rows
    sel = bb_padded[idx]                                         # (S, 2D)
    return jnp.concatenate([sel[:, :D], sel[:, D:]], axis=0)     # (2S, D)


@functools.partial(jax.jit, static_argnames=("mol_feat_dim", "bb_sample_size"))
def _mrf_forward_jit(key, bb_padded, lengths, params, *,
                     mol_feat_dim, bb_sample_size):
    R = bb_padded.shape[0]
    perm_key, sample_key = jax.random.split(key)
    perm_keys = jax.random.split(perm_key, R)

    cuts = jax.vmap(
        lambda k, bb, n: _subsample_cut(k, bb, n, bb_sample_size, mol_feat_dim)
    )(perm_keys, bb_padded, lengths)                             # (R, 2S, D)

    mol_flat = cuts.reshape(R * 2 * bb_sample_size,
                            mol_feat_dim).astype(jnp.bfloat16)

    log_p_rxt_all = mrf_log_p_rxt(mol_flat, params, R, bb_sample_size)  # (R,)
    p_rxt_all = jnp.exp(log_p_rxt_all)       # matches torch.exp of log potentials

    # Categorical(p).sample() + log_prob, done on logits (numerically safe).
    a = jax.random.categorical(sample_key, log_p_rxt_all)
    log_prob = log_p_rxt_all[a] - jax.scipy.special.logsumexp(log_p_rxt_all)
    return a, p_rxt_all, log_prob


def prepare_bb_pairs(rxt2bb_pair, mol_feat_dim, bb_sample_size):
    """One-time host prep: pad ragged bb tables into (R, N_max, 2D) + lengths."""
    rxt_keys = list(rxt2bb_pair.keys())
    n_max = 0
    for r in rxt_keys:
        n, fd = rxt2bb_pair[r].shape
        assert fd == 2 * mol_feat_dim
        assert n >= bb_sample_size, f"reaction {r} has < bb_sample_size pairs"
        n_max = max(n_max, n)
    bb_padded = jnp.stack([
        jnp.pad(rxt2bb_pair[r],
                ((0, n_max - rxt2bb_pair[r].shape[0]), (0, 0)))
        for r in rxt_keys])
    lengths = jnp.array([rxt2bb_pair[r].shape[0] for r in rxt_keys], jnp.int32)
    return rxt_keys, bb_padded, lengths


def mrf_forward(key, bb_padded, lengths, params, mol_feat_dim, bb_sample_size):
    """MRFModel.forward(): returns device arrays (sample index, p_rxt_all,
    log_prob); the reaction-key lookup (host sync) is deferred to the caller."""
    return _mrf_forward_jit(key, bb_padded, lengths, params,
                            mol_feat_dim=mol_feat_dim,
                            bb_sample_size=bb_sample_size)


if __name__ == "__main__":
    mol_feat_dim = 32
    hidden_size = 32
    bb_sample_size = 8
    num_rxts = 4

    root = jax.random.PRNGKey(0)
    k_params, k_data, k_fwd = jax.random.split(root, 3)

    params = init_params(k_params, mol_feat_dim, hidden_size, bb_sample_size)

    # rxt2bb_pair: dict of reaction id -> (num_bb_pairs, 2*mol_feat_dim)
    data_keys = jax.random.split(k_data, num_rxts)
    num_pairs = [12, 20, 16, 10]
    rxt2bb_pair = {
        r: jax.random.normal(data_keys[r], (num_pairs[r], 2 * mol_feat_dim),
                             jnp.float32)
        for r in range(num_rxts)
    }

    rxt_keys, bb_padded, lengths = prepare_bb_pairs(
        rxt2bb_pair, mol_feat_dim, bb_sample_size)

    a, p_rxt_all, log_prob = mrf_forward(
        k_fwd, bb_padded, lengths, params, mol_feat_dim, bb_sample_size)

    jax.block_until_ready((a, p_rxt_all, log_prob))
    sample_rxt = rxt_keys[int(a)]          # host sync deferred to after block

    assert p_rxt_all.shape == (num_rxts,)
    assert sample_rxt in rxt2bb_pair
    assert bool(jnp.isfinite(log_prob))
    print("KERNEL_OK")
</pallas_src>

<mosaic_0001>
module attributes {stable_mosaic.version = 11 : i64} {
  func.func @_mrf_potential_lse_kernel(%arg0: memref<64x32xbf16, #tpu.memory_space<vmem>>, %arg1: memref<32x32xbf16, #tpu.memory_space<vmem>>, %arg2: memref<1x32xf32, #tpu.memory_space<vmem>>, %arg3: memref<32x32xbf16, #tpu.memory_space<vmem>>, %arg4: memref<1x32xf32, #tpu.memory_space<vmem>>, %arg5: memref<1x32xf32, #tpu.memory_space<vmem>>, %arg6: memref<1x1xf32, #tpu.memory_space<smem>>, %arg7: memref<1x4xf32, #tpu.memory_space<vmem>>) attributes {dimension_semantics = [], scalar_prefetch = 0 : i64, scratch_operands = 0 : i64, tpu.core_type = #tpu.core_type<tc>} {
    %c0 = arith.constant 0 : index
    %c0_0 = arith.constant 0 : index
    %0 = vector.load %arg0[%c0, %c0_0] : memref<64x32xbf16, #tpu.memory_space<vmem>>, vector<64x32xbf16>
    %c0_1 = arith.constant 0 : index
    %c0_2 = arith.constant 0 : index
    %1 = vector.load %arg1[%c0_1, %c0_2] : memref<32x32xbf16, #tpu.memory_space<vmem>>, vector<32x32xbf16>
    %cst = arith.constant dense<0.000000e+00> : vector<64x32xf32>
    %2 = tpu.matmul %0, %1, %cst {dimension_numbers = #tpu.dot_dimension_numbers<[1], [0], [0], [1], [0, 0, 1, 1], [], []>} : vector<64x32xbf16>, vector<32x32xbf16>, vector<64x32xf32> -> vector<64x32xf32>
    %c0_3 = arith.constant 0 : index
    %c0_4 = arith.constant 0 : index
    %3 = vector.load %arg2[%c0_3, %c0_4] : memref<1x32xf32, #tpu.memory_space<vmem>>, vector<1x32xf32>
    %4 = vector.broadcast %3 : vector<1x32xf32> to vector<64x32xf32>
    %5 = arith.addf %2, %4 : vector<64x32xf32>
    %cst_5 = arith.constant 0.000000e+00 : f32
    %6 = vector.broadcast %cst_5 : f32 to vector<64x32xf32>
    %7 = arith.maximumf %5, %6 : vector<64x32xf32>
    %8 = arith.truncf %7 : vector<64x32xf32> to vector<64x32xbf16>
    %c0_6 = arith.constant 0 : index
    %c0_7 = arith.constant 0 : index
    %9 = vector.load %arg3[%c0_6, %c0_7] : memref<32x32xbf16, #tpu.memory_space<vmem>>, vector<32x32xbf16>
    %cst_8 = arith.constant dense<0.000000e+00> : vector<64x32xf32>
    %10 = tpu.matmul %8, %9, %cst_8 {dimension_numbers = #tpu.dot_dimension_numbers<[1], [0], [0], [1], [0, 0, 1, 1], [], []>} : vector<64x32xbf16>, vector<32x32xbf16>, vector<64x32xf32> -> vector<64x32xf32>
    %c0_9 = arith.constant 0 : index
    %c0_10 = arith.constant 0 : index
    %11 = vector.load %arg4[%c0_9, %c0_10] : memref<1x32xf32, #tpu.memory_space<vmem>>, vector<1x32xf32>
    %12 = vector.broadcast %11 : vector<1x32xf32> to vector<64x32xf32>
    %13 = arith.addf %10, %12 : vector<64x32xf32>
    %cst_11 = arith.constant 0.000000e+00 : f32
    %14 = vector.broadcast %cst_11 : f32 to vector<64x32xf32>
    %15 = arith.maximumf %13, %14 : vector<64x32xf32>
    %c0_12 = arith.constant 0 : index
    %c0_13 = arith.constant 0 : index
    %16 = vector.load %arg5[%c0_12, %c0_13] : memref<1x32xf32, #tpu.memory_space<vmem>>, vector<1x32xf32>
    %17 = vector.broadcast %16 : vector<1x32xf32> to vector<64x32xf32>
    %18 = arith.mulf %15, %17 : vector<64x32xf32>
    %cst_14 = arith.constant dense<0.000000e+00> : vector<64xf32>
    %19 = vector.multi_reduction <add>, %18, %cst_14 [1] : vector<64x32xf32> to vector<64xf32>
    %20 = vector.shape_cast %19 : vector<64xf32> to vector<64x1xf32>
    %c0_15 = arith.constant 0 : index
    %c0_16 = arith.constant 0 : index
    %21 = memref.load %arg6[%c0_15, %c0_16] : memref<1x1xf32, #tpu.memory_space<smem>>
    %22 = tpu.iota {dimensions = array<i32: 1>} : vector<1x4xi32>
    %cst_17 = arith.constant 0.000000e+00 : f32
    %23 = vector.broadcast %cst_17 : f32 to vector<1x4xf32>
    %24 = vector.extract_strided_slice %20 {offsets = [0, 0], sizes = [8, 1], strides = [1, 1]} : vector<64x1xf32> to vector<8x1xf32>
    %cst_18 = arith.constant dense<0xFF800000> : vector<1xf32>
    %25 = vector.multi_reduction <maximumf>, %24, %cst_18 [0] : vector<8x1xf32> to vector<1xf32>
    %26 = vector.shape_cast %25 : vector<1xf32> to vector<1x1xf32>
    %27 = vector.broadcast %26 : vector<1x1xf32> to vector<8x1xf32>
    %28 = arith.subf %24, %27 : vector<8x1xf32>
    %29 = math.exp %28 : vector<8x1xf32>
    %cst_19 = arith.constant dense<0.000000e+00> : vector<1xf32>
    %30 = vector.multi_reduction <add>, %29, %cst_19 [0] : vector<8x1xf32> to vector<1xf32>
    %31 = vector.shape_cast %30 : vector<1xf32> to vector<1x1xf32>
    %32 = math.log %31 : vector<1x1xf32>
    %33 = arith.addf %26, %32 : vector<1x1xf32>
    %34 = vector.extract_strided_slice %20 {offsets = [8, 0], sizes = [8, 1], strides = [1, 1]} : vector<64x1xf32> to vector<8x1xf32>
    %cst_20 = arith.constant dense<0xFF800000> : vector<1xf32>
    %35 = vector.multi_reduction <maximumf>, %34, %cst_20 [0] : vector<8x1xf32> to vector<1xf32>
    %36 = vector.shape_cast %35 : vector<1xf32> to vector<1x1xf32>
    %37 = vector.broadcast %36 : vector<1x1xf32> to vector<8x1xf32>
    %38 = arith.subf %34, %37 : vector<8x1xf32>
    %39 = math.exp %38 : vector<8x1xf32>
    %cst_21 = arith.constant dense<0.000000e+00> : vector<1xf32>
    %40 = vector.multi_reduction <add>, %39, %cst_21 [0] : vector<8x1xf32> to vector<1xf32>
    %41 = vector.shape_cast %40 : vector<1xf32> to vector<1x1xf32>
    %42 = math.log %41 : vector<1x1xf32>
    %43 = arith.addf %36, %42 : vector<1x1xf32>
    %44 = arith.addf %33, %43 : vector<1x1xf32>
    %45 = vector.broadcast %21 : f32 to vector<1x1xf32>
    %46 = arith.addf %44, %45 : vector<1x1xf32>
    %c0_i32 = arith.constant 0 : i32
    %47 = vector.broadcast %c0_i32 : i32 to vector<1x4xi32>
    %48 = arith.cmpi eq, %22, %47 : vector<1x4xi32>
    %49 = vector.shape_cast %46 : vector<1x1xf32> to vector<1x1xf32>
    %50 = vector.broadcast %49 : vector<1x1xf32> to vector<1x4xf32>
    %51 = arith.select %48, %50, %23 : vector<1x4xi1>, vector<1x4xf32>
    %52 = vector.extract_strided_slice %20 {offsets = [16, 0], sizes = [8, 1], strides = [1, 1]} : vector<64x1xf32> to vector<8x1xf32>
    %cst_22 = arith.constant dense<0xFF800000> : vector<1xf32>
    %53 = vector.multi_reduction <maximumf>, %52, %cst_22 [0] : vector<8x1xf32> to vector<1xf32>
    %54 = vector.shape_cast %53 : vector<1xf32> to vector<1x1xf32>
    %55 = vector.broadcast %54 : vector<1x1xf32> to vector<8x1xf32>
    %56 = arith.subf %52, %55 : vector<8x1xf32>
    %57 = math.exp %56 : vector<8x1xf32>
    %cst_23 = arith.constant dense<0.000000e+00> : vector<1xf32>
    %58 = vector.multi_reduction <add>, %57, %cst_23 [0] : vector<8x1xf32> to vector<1xf32>
    %59 = vector.shape_cast %58 : vector<1xf32> to vector<1x1xf32>
    %60 = math.log %59 : vector<1x1xf32>
    %61 = arith.addf %54, %60 : vector<1x1xf32>
    %62 = vector.extract_strided_slice %20 {offsets = [24, 0], sizes = [8, 1], strides = [1, 1]} : vector<64x1xf32> to vector<8x1xf32>
    %cst_24 = arith.constant dense<0xFF800000> : vector<1xf32>
    %63 = vector.multi_reduction <maximumf>, %62, %cst_24 [0] : vector<8x1xf32> to vector<1xf32>
    %64 = vector.shape_cast %63 : vector<1xf32> to vector<1x1xf32>
    %65 = vector.broadcast %64 : vector<1x1xf32> to vector<8x1xf32>
    %66 = arith.subf %62, %65 : vector<8x1xf32>
    %67 = math.exp %66 : vector<8x1xf32>
    %cst_25 = arith.constant dense<0.000000e+00> : vector<1xf32>
    %68 = vector.multi_reduction <add>, %67, %cst_25 [0] : vector<8x1xf32> to vector<1xf32>
    %69 = vector.shape_cast %68 : vector<1xf32> to vector<1x1xf32>
    %70 = math.log %69 : vector<1x1xf32>
    %71 = arith.addf %64, %70 : vector<1x1xf32>
    %72 = arith.addf %61, %71 : vector<1x1xf32>
    %73 = vector.broadcast %21 : f32 to vector<1x1xf32>
    %74 = arith.addf %72, %73 : vector<1x1xf32>
    %c1_i32 = arith.constant 1 : i32
    %75 = vector.broadcast %c1_i32 : i32 to vector<1x4xi32>
    %76 = arith.cmpi eq, %22, %75 : vector<1x4xi32>
    %77 = vector.shape_cast %74 : vector<1x1xf32> to vector<1x1xf32>
    %78 = vector.broadcast %77 : vector<1x1xf32> to vector<1x4xf32>
    %79 = arith.select %76, %78, %51 : vector<1x4xi1>, vector<1x4xf32>
    %80 = vector.extract_strided_slice %20 {offsets = [32, 0], sizes = [8, 1], strides = [1, 1]} : vector<64x1xf32> to vector<8x1xf32>
    %cst_26 = arith.constant dense<0xFF800000> : vector<1xf32>
    %81 = vector.multi_reduction <maximumf>, %80, %cst_26 [0] : vector<8x1xf32> to vector<1xf32>
    %82 = vector.shape_cast %81 : vector<1xf32> to vector<1x1xf32>
    %83 = vector.broadcast %82 : vector<1x1xf32> to vector<8x1xf32>
    %84 = arith.subf %80, %83 : vector<8x1xf32>
    %85 = math.exp %84 : vector<8x1xf32>
    %cst_27 = arith.constant dense<0.000000e+00> : vector<1xf32>
    %86 = vector.multi_reduction <add>, %85, %cst_27 [0] : vector<8x1xf32> to vector<1xf32>
    %87 = vector.shape_cast %86 : vector<1xf32> to vector<1x1xf32>
    %88 = math.log %87 : vector<1x1xf32>
    %89 = arith.addf %82, %88 : vector<1x1xf32>
    %90 = vector.extract_strided_slice %20 {offsets = [40, 0], sizes = [8, 1], strides = [1, 1]} : vector<64x1xf32> to vector<8x1xf32>
    %cst_28 = arith.constant dense<0xFF800000> : vector<1xf32>
    %91 = vector.multi_reduction <maximumf>, %90, %cst_28 [0] : vector<8x1xf32> to vector<1xf32>
    %92 = vector.shape_cast %91 : vector<1xf32> to vector<1x1xf32>
    %93 = vector.broadcast %92 : vector<1x1xf32> to vector<8x1xf32>
    %94 = arith.subf %90, %93 : vector<8x1xf32>
    %95 = math.exp %94 : vector<8x1xf32>
    %cst_29 = arith.constant dense<0.000000e+00> : vector<1xf32>
    %96 = vector.multi_reduction <add>, %95, %cst_29 [0] : vector<8x1xf32> to vector<1xf32>
    %97 = vector.shape_cast %96 : vector<1xf32> to vector<1x1xf32>
    %98 = math.log %97 : vector<1x1xf32>
    %99 = arith.addf %92, %98 : vector<1x1xf32>
    %100 = arith.addf %89, %99 : vector<1x1xf32>
    %101 = vector.broadcast %21 : f32 to vector<1x1xf32>
    %102 = arith.addf %100, %101 : vector<1x1xf32>
    %c2_i32 = arith.constant 2 : i32
    %103 = vector.broadcast %c2_i32 : i32 to vector<1x4xi32>
    %104 = arith.cmpi eq, %22, %103 : vector<1x4xi32>
    %105 = vector.shape_cast %102 : vector<1x1xf32> to vector<1x1xf32>
    %106 = vector.broadcast %105 : vector<1x1xf32> to vector<1x4xf32>
    %107 = arith.select %104, %106, %79 : vector<1x4xi1>, vector<1x4xf32>
    %108 = vector.extract_strided_slice %20 {offsets = [48, 0], sizes = [8, 1], strides = [1, 1]} : vector<64x1xf32> to vector<8x1xf32>
    %cst_30 = arith.constant dense<0xFF800000> : vector<1xf32>
    %109 = vector.multi_reduction <maximumf>, %108, %cst_30 [0] : vector<8x1xf32> to vector<1xf32>
    %110 = vector.shape_cast %109 : vector<1xf32> to vector<1x1xf32>
    %111 = vector.broadcast %110 : vector<1x1xf32> to vector<8x1xf32>
    %112 = arith.subf %108, %111 : vector<8x1xf32>
    %113 = math.exp %112 : vector<8x1xf32>
    %cst_31 = arith.constant dense<0.000000e+00> : vector<1xf32>
    %114 = vector.multi_reduction <add>, %113, %cst_31 [0] : vector<8x1xf32> to vector<1xf32>
    %115 = vector.shape_cast %114 : vector<1xf32> to vector<1x1xf32>
    %116 = math.log %115 : vector<1x1xf32>
    %117 = arith.addf %110, %116 : vector<1x1xf32>
    %118 = vector.extract_strided_slice %20 {offsets = [56, 0], sizes = [8, 1], strides = [1, 1]} : vector<64x1xf32> to vector<8x1xf32>
    %cst_32 = arith.constant dense<0xFF800000> : vector<1xf32>
    %119 = vector.multi_reduction <maximumf>, %118, %cst_32 [0] : vector<8x1xf32> to vector<1xf32>
    %120 = vector.shape_cast %119 : vector<1xf32> to vector<1x1xf32>
    %121 = vector.broadcast %120 : vector<1x1xf32> to vector<8x1xf32>
    %122 = arith.subf %118, %121 : vector<8x1xf32>
    %123 = math.exp %122 : vector<8x1xf32>
    %cst_33 = arith.constant dense<0.000000e+00> : vector<1xf32>
    %124 = vector.multi_reduction <add>, %123, %cst_33 [0] : vector<8x1xf32> to vector<1xf32>
    %125 = vector.shape_cast %124 : vector<1xf32> to vector<1x1xf32>
    %126 = math.log %125 : vector<1x1xf32>
    %127 = arith.addf %120, %126 : vector<1x1xf32>
    %128 = arith.addf %117, %127 : vector<1x1xf32>
    %129 = vector.broadcast %21 : f32 to vector<1x1xf32>
    %130 = arith.addf %128, %129 : vector<1x1xf32>
    %c3_i32 = arith.constant 3 : i32
    %131 = vector.broadcast %c3_i32 : i32 to vector<1x4xi32>
    %132 = arith.cmpi eq, %22, %131 : vector<1x4xi32>
    %133 = vector.shape_cast %130 : vector<1x1xf32> to vector<1x1xf32>
    %134 = vector.broadcast %133 : vector<1x1xf32> to vector<1x4xf32>
    %135 = arith.select %132, %134, %107 : vector<1x4xi1>, vector<1x4xf32>
    %c0_34 = arith.constant 0 : index
    %c0_35 = arith.constant 0 : index
    %136 = vector.load %arg7[%c0_34, %c0_35] : memref<1x4xf32, #tpu.memory_space<vmem>>, vector<1x4xf32>
    tpu.vector_store %arg7[%c0_34, %c0_35], %135 {strides = array<i32>} : memref<1x4xf32, #tpu.memory_space<vmem>>, vector<1x4xf32>,
    return
  }
}

</mosaic_0001>

<llo_original>
// kernel: _mrf_forward_jit.9
$region0: #{_mrf_forward_jit.9}
  #allocation0 [shape = 'u32[]', space=smem, size = 0x4, offset = 0x4, fixed_abs, tag = 'smem constant byte address 0x4 - core index']
  #allocation1 [shape = 'u32[72,128]{1,0:T(1,128)}', space=vmem, size = 0x9000, scoped, tag = 'internal scratch']
  #allocation2 [shape = 'f32[1,1]{1,0:T(1,128)S(6)}', space=smem, size = 0x200, scoped, tag = 'scoped memory for _mrf_forward_jit.9']
  %s0 = inlined_call_operand.vmem [shape: bf16[64,32], index: 0, kind: input, shape index: {}]
  %s1 = inlined_call_operand.vmem [shape: bf16[32,32], index: 1, kind: input, shape index: {}]
  %s2 = inlined_call_operand.vmem [shape: f32[1,32], index: 2, kind: input, shape index: {}]
  %s3 = inlined_call_operand.vmem [shape: bf16[32,32], index: 3, kind: input, shape index: {}]
  %s4 = inlined_call_operand.vmem [shape: f32[1,32], index: 4, kind: input, shape index: {}]
  %s5 = inlined_call_operand.vmem [shape: f32[1,32], index: 5, kind: input, shape index: {}]
  %s6 = inlined_call_operand.<no memory space> [shape: f32[1,1], index: 6, kind: input, shape index: {}]
  %s7 = inlined_call_operand.vmem [shape: f32[1,4], index: 7, kind: output, shape index: {}]
  %s8 = sld [smem:[#allocation0]]
  $region38: #{_mrf_forward_jit.9} parent=0
    _
  %s10 = ssub.s32 1, %s8
  %s11 = scalar_select 0, %s10, %s8
  %12 = sst [smem:[#allocation2]] %s6
  // Predicated region
  $region2: #{_mrf_forward_jit.9} parent=0 // pred_check
    _
  $region3: #{_mrf_forward_jit.9} parent=0 // pred_check_branch
    %14 = sbr.rel (0) target = $region5
  $region4: #{_mrf_forward_jit.9} parent=0 // pred_region
    _
  $region5: #{_mrf_forward_jit.9} parent=0 // pred_fallthru
    _
  // Predicated region
  $region6: #{_mrf_forward_jit.9} parent=0 // pred_check
    _
  $region7: #{_mrf_forward_jit.9} parent=0 // pred_check_branch
    %16 = sbr.rel (0) target = $region9
  $region8: #{_mrf_forward_jit.9} parent=0 // pred_region
    _
  $region9: #{_mrf_forward_jit.9} parent=0 // pred_fallthru
    _
  // Predicated region
  $region10: #{_mrf_forward_jit.9} parent=0 // pred_check
    _
  $region11: #{_mrf_forward_jit.9} parent=0 // pred_check_branch
    %18 = sbr.rel (0) target = $region13
  $region12: #{_mrf_forward_jit.9} parent=0 // pred_region
    _
  $region13: #{_mrf_forward_jit.9} parent=0 // pred_fallthru
    _
  // Predicated region
  $region14: #{_mrf_forward_jit.9} parent=0 // pred_check
    _
  $region15: #{_mrf_forward_jit.9} parent=0 // pred_check_branch
    %20 = sbr.rel (0) target = $region17
  $region16: #{_mrf_forward_jit.9} parent=0 // pred_region
    _
  $region17: #{_mrf_forward_jit.9} parent=0 // pred_fallthru
    _
  // Predicated region
  $region18: #{_mrf_forward_jit.9} parent=0 // pred_check
    _
  $region19: #{_mrf_forward_jit.9} parent=0 // pred_check_branch
    %22 = sbr.rel (0) target = $region21
  $region20: #{_mrf_forward_jit.9} parent=0 // pred_region
    _
  $region21: #{_mrf_forward_jit.9} parent=0 // pred_fallthru
    _
  // Predicated region
  $region22: #{_mrf_forward_jit.9} parent=0 // pred_check
    _
  $region23: #{_mrf_forward_jit.9} parent=0 // pred_check_branch
    %24 = sbr.rel (0) target = $region25
  $region24: #{_mrf_forward_jit.9} parent=0 // pred_region
    _
  $region25: #{_mrf_forward_jit.9} parent=0 // pred_fallthru
    _
  // Predicated region
  $region26: #{_mrf_forward_jit.9} parent=0 // pred_check
    _
  $region27: #{_mrf_forward_jit.9} parent=0 // pred_check_branch
    %26 = sbr.rel (0) target = $region29
  $region28: #{_mrf_forward_jit.9} parent=0 // pred_region
    _
  $region29: #{_mrf_forward_jit.9} parent=0 // pred_fallthru
    _
  %v28 = vld [vmem:[%s0] sm:$0xf]
  %v29 = vld [vmem:[%s0 + $0x4] sm:$0xf]
  %v30 = vld [vmem:[%s0 + $0x8] sm:$0xf]
  %v31 = vld [vmem:[%s0 + $0xc] sm:$0xf]
  %v32 = vld [vmem:[%s0 + $0x10] sm:$0xf]
  %v33 = vld [vmem:[%s0 + $0x14] sm:$0xf]
  %v34 = vld [vmem:[%s0 + $0x18] sm:$0xf]
  %v35 = vld [vmem:[%s0 + $0x1c] sm:$0xf]
  %v36 = vld [vmem:[%s1] sm:$0xf]
  %v37 = vld [vmem:[%s1 + $0x4] sm:$0xf]
  %v38 = vld [vmem:[%s1 + $0x8] sm:$0xf]
  %v39 = vld [vmem:[%s1 + $0xc] sm:$0xf]
  %v40 = vld [vmem:[%s2] sm:$0x1]
  %v42 = vperm.slane %v40, 0
  %v52 = vunpack.c.l.b16 %v28
  %v53 = vunpack.c.l.b16 %v29
  %v54 = vunpack.c.l.b16 %v30
  %v55 = vunpack.c.l.b16 %v31
  %v56 = vunpack.c.l.b16 %v32
  %v57 = vunpack.c.l.b16 %v33
  %v58 = vunpack.c.l.b16 %v34
  %v59 = vunpack.c.l.b16 %v35
  %v60 = vpack.c.b16 %v53, %v52
  %v61 = vpack.c.b16 %v55, %v54
  %v62 = vpack.c.b16 %v57, %v56
  %v63 = vpack.c.b16 %v59, %v58
  %v68 = vunpack.c.l.b16 %v36
  %v69 = vunpack.c.l.b16 %v37
  %v70 = vunpack.c.l.b16 %v38
  %v71 = vunpack.c.l.b16 %v39
  %v72 = vpack.c.b16 %v69, %v68
  %v73 = vpack.c.b16 %v71, %v70
  %vm76 = vcmask 261120
  %v78 = vsel %vm76, %v60, 0
  %v81 = vsel %vm76, %v61, 0
  %v84 = vsel %vm76, %v62, 0
  %v87 = vsel %vm76, %v63, 0
  %89 = vmatpush.bf16.msra.mxu0 0
  %90 = vmatpush.bf16.msra.mxu0 0
  %91 = vmatpush.bf16.msra.mxu0 0
  %92 = vmatpush.bf16.msra.mxu0 0
  %93 = vmatpush.bf16.msra.mxu0 0
  %94 = vmatpush.bf16.msra.mxu0 0
  %95 = vmatpush.bf16.msra.mxu0 %v73
  %96 = vmatpush.bf16.msra.mxu0 %v72
  %97 = vmatmul.bf16.gmra.mxu0 %v78
  %v98 = vpop.f32.mrf.mxu0
  %v99 = vadd.f32 %v42, %v98
  %v100 = vpop.f32.mrf.mxu0
  %v101 = vadd.f32 %v42, %v100
  %102 = vmatmul.bf16.gmra.mxu0 %v81
  %v103 = vpop.f32.mrf.mxu0
  %v104 = vadd.f32 %v42, %v103
  %v105 = vpop.f32.mrf.mxu0
  %v106 = vadd.f32 %v42, %v105
  %107 = vmatmul.bf16.gmra.mxu0 %v84
  %v108 = vpop.f32.mrf.mxu0
  %v109 = vadd.f32 %v42, %v108
  %v110 = vpop.f32.mrf.mxu0
  %v111 = vadd.f32 %v42, %v110
  %112 = vmatmul.bf16.gmra.mxu0 %v87
  %v113 = vpop.f32.mrf.mxu0
  %v114 = vadd.f32 %v42, %v113
  %v115 = vpop.f32.mrf.mxu0
  %v116 = vadd.f32 %v42, %v115
  %117 = vdwg.mxu0
  %v118 = vmax.f32 %v99, 0.0
  %v119 = vmax.f32 %v101, 0.0
  %v120 = vmax.f32 %v104, 0.0
  %v121 = vmax.f32 %v106, 0.0
  %v122 = vmax.f32 %v109, 0.0
  %v123 = vmax.f32 %v111, 0.0
  %v124 = vmax.f32 %v114, 0.0
  %v125 = vmax.f32 %v116, 0.0
  %v126 = vpack.c.bf16 %v119, %v118
  %v127 = vpack.c.bf16 %v121, %v120
  %v128 = vpack.c.bf16 %v123, %v122
  %v129 = vpack.c.bf16 %v125, %v124
  %v130 = vld [vmem:[%s3] sm:$0xf]
  %v131 = vld [vmem:[%s3 + $0x4] sm:$0xf]
  %v132 = vld [vmem:[%s3 + $0x8] sm:$0xf]
  %v133 = vld [vmem:[%s3 + $0xc] sm:$0xf]
  %v134 = vld [vmem:[%s4] sm:$0x1]
  %v136 = vperm.slane %v134, 0
  %v142 = vunpack.c.l.b16 %v130
  %v143 = vunpack.c.l.b16 %v131
  %v144 = vunpack.c.l.b16 %v132
  %v145 = vunpack.c.l.b16 %v133
  %v146 = vpack.c.b16 %v143, %v142
  %v147 = vpack.c.b16 %v145, %v144
  %v151 = vsel %vm76, %v126, 0
  %v154 = vsel %vm76, %v127, 0
  %v157 = vsel %vm76, %v128, 0
  %v160 = vsel %vm76, %v129, 0
  %162 = vmatpush.bf16.msra.mxu0 0
  %163 = vmatpush.bf16.msra.mxu0 0
  %164 = vmatpush.bf16.msra.mxu0 0
  %165 = vmatpush.bf16.msra.mxu0 0
  %166 = vmatpush.bf16.msra.mxu0 0
  %167 = vmatpush.bf16.msra.mxu0 0
  %168 = vmatpush.bf16.msra.mxu0 %v147
  %169 = vmatpush.bf16.msra.mxu0 %v146
  %170 = vmatmul.bf16.gmra.mxu0 %v151
  %v171 = vpop.f32.mrf.mxu0
  %v172 = vadd.f32 %v136, %v171
  %v173 = vpop.f32.mrf.mxu0
  %v174 = vadd.f32 %v136, %v173
  %175 = vmatmul.bf16.gmra.mxu0 %v154
  %v176 = vpop.f32.mrf.mxu0
  %v177 = vadd.f32 %v136, %v176
  %v178 = vpop.f32.mrf.mxu0
  %v179 = vadd.f32 %v136, %v178
  %180 = vmatmul.bf16.gmra.mxu0 %v157
  %v181 = vpop.f32.mrf.mxu0
  %v182 = vadd.f32 %v136, %v181
  %v183 = vpop.f32.mrf.mxu0
  %v184 = vadd.f32 %v136, %v183
  %185 = vmatmul.bf16.gmra.mxu0 %v160
  %v186 = vpop.f32.mrf.mxu0
  %v187 = vadd.f32 %v136, %v186
  %v188 = vpop.f32.mrf.mxu0
  %v189 = vadd.f32 %v136, %v188
  %190 = vdwg.mxu0
  %v191 = vmax.f32 %v172, 0.0
  %v192 = vmax.f32 %v174, 0.0
  %v193 = vmax.f32 %v177, 0.0
  %v194 = vmax.f32 %v179, 0.0
  %v195 = vmax.f32 %v182, 0.0
  %v196 = vmax.f32 %v184, 0.0
  %v197 = vmax.f32 %v187, 0.0
  %v198 = vmax.f32 %v189, 0.0
  %v199 = vld [vmem:[%s5] sm:$0x1]
  %v201 = vperm.slane %v199, 0
  %v203 = vmul.f32 %v191, %v201
  %v204 = vmul.f32 %v192, %v201
  %v205 = vmul.f32 %v193, %v201
  %v206 = vmul.f32 %v194, %v201
  %v207 = vmul.f32 %v195, %v201
  %v208 = vmul.f32 %v196, %v201
  %v209 = vmul.f32 %v197, %v201
  %v210 = vmul.f32 %v198, %v201
  %v211 = vsel %vm76, %v203, 0.0
  %212 = vadd.xlane.f32.xlu0 %v211
  %v213 = vpop.xlane.xlu0 %212
  %v214 = vsel %vm76, %v204, 0.0
  %215 = vadd.xlane.f32.xlu0 %v214
  %v216 = vpop.xlane.xlu0 %215
  %v217 = vsel %vm76, %v205, 0.0
  %218 = vadd.xlane.f32.xlu0 %v217
  %v219 = vpop.xlane.xlu0 %218
  %v220 = vsel %vm76, %v206, 0.0
  %221 = vadd.xlane.f32.xlu0 %v220
  %v222 = vpop.xlane.xlu0 %221
  %v223 = vsel %vm76, %v207, 0.0
  %224 = vadd.xlane.f32.xlu0 %v223
  %v225 = vpop.xlane.xlu0 %224
  %v226 = vsel %vm76, %v208, 0.0
  %227 = vadd.xlane.f32.xlu0 %v226
  %v228 = vpop.xlane.xlu0 %227
  %v229 = vsel %vm76, %v209, 0.0
  %230 = vadd.xlane.f32.xlu0 %v229
  %v231 = vpop.xlane.xlu0 %230
  %v232 = vsel %vm76, %v210, 0.0
  %233 = vadd.xlane.f32.xlu0 %v232
  %v234 = vpop.xlane.xlu0 %233
  %s235 = sld [smem:[#allocation2]]
  %v236 = vlaneseq
  %v237 = vand.u32 %v236, 127
  %v238 = vrot.slane %v213, 4
  %v239 = vmax.f32 %v213, %v238
  %v240 = vrot.slane %v239, 2
  %v241 = vmax.f32 %v239, %v240
  %v242 = vrot.slane %v241, 1
  %v243 = vmax.f32 %v241, %v242
  %v244 = vsub.f32 %v213, %v243
  %v245 = vmul.f32 %v244, 1.442695
  %v246 = vpow.pop %v245
  %v247 = vrot.slane %v246, 4
  %v248 = vadd.f32 %v246, %v247
  %v249 = vrot.slane %v248, 2
  %v250 = vadd.f32 %v248, %v249
  %v251 = vrot.slane %v250, 1
  %v252 = vadd.f32 %v250, %v251
  %v253 = vlog2.pop %v252
  %v254 = vmul.f32 %v253, 0.6931472
  %v255 = vadd.f32 %v243, %v254
  %v256 = vrot.slane %v216, 4
  %v257 = vmax.f32 %v216, %v256
  %v258 = vrot.slane %v257, 2
  %v259 = vmax.f32 %v257, %v258
  %v260 = vrot.slane %v259, 1
  %v261 = vmax.f32 %v259, %v260
  %v262 = vsub.f32 %v216, %v261
  %v263 = vmul.f32 %v262, 1.442695
  %v264 = vpow.pop %v263
  %v265 = vrot.slane %v264, 4
  %v266 = vadd.f32 %v264, %v265
  %v267 = vrot.slane %v266, 2
  %v268 = vadd.f32 %v266, %v267
  %v269 = vrot.slane %v268, 1
  %v270 = vadd.f32 %v268, %v269
  %v271 = vlog2.pop %v270
  %v272 = vmul.f32 %v271, 0.6931472
  %v273 = vadd.f32 %v261, %v272
  %v274 = vadd.f32 %v255, %v273
  %v275 = vstv %s235
  %v276 = vadd.f32 %v274, %v275
  %vm277 = vcmp.eq.s32.totalorder %v237, 0
  %v278 = vsel %vm277, %v276, 0.0
  %v279 = vrot.slane %v219, 4
  %v280 = vmax.f32 %v219, %v279
  %v281 = vrot.slane %v280, 2
  %v282 = vmax.f32 %v280, %v281
  %v283 = vrot.slane %v282, 1
  %v284 = vmax.f32 %v282, %v283
  %v285 = vsub.f32 %v219, %v284
  %v286 = vmul.f32 %v285, 1.442695
  %v287 = vpow.pop %v286
  %v288 = vrot.slane %v287, 4
  %v289 = vadd.f32 %v287, %v288
  %v290 = vrot.slane %v289, 2
  %v291 = vadd.f32 %v289, %v290
  %v292 = vrot.slane %v291, 1
  %v293 = vadd.f32 %v291, %v292
  %v294 = vlog2.pop %v293
  %v295 = vmul.f32 %v294, 0.6931472
  %v296 = vadd.f32 %v284, %v295
  %v297 = vrot.slane %v222, 4
  %v298 = vmax.f32 %v222, %v297
  %v299 = vrot.slane %v298, 2
  %v300 = vmax.f32 %v298, %v299
  %v301 = vrot.slane %v300, 1
  %v302 = vmax.f32 %v300, %v301
  %v303 = vsub.f32 %v222, %v302
  %v304 = vmul.f32 %v303, 1.442695
  %v305 = vpow.pop %v304
  %v306 = vrot.slane %v305, 4
  %v307 = vadd.f32 %v305, %v306
  %v308 = vrot.slane %v307, 2
  %v309 = vadd.f32 %v307, %v308
  %v310 = vrot.slane %v309, 1
  %v311 = vadd.f32 %v309, %v310
  %v312 = vlog2.pop %v311
  %v313 = vmul.f32 %v312, 0.6931472
  %v314 = vadd.f32 %v302, %v313
  %v315 = vadd.f32 %v296, %v314
  %v316 = vadd.f32 %v315, %v275
  %vm317 = vcmp.eq.s32.totalorder %v237, 1
  %v318 = vsel %vm317, %v316, %v278
  %v319 = vrot.slane %v225, 4
  %v320 = vmax.f32 %v225, %v319
  %v321 = vrot.slane %v320, 2
  %v322 = vmax.f32 %v320, %v321
  %v323 = vrot.slane %v322, 1
  %v324 = vmax.f32 %v322, %v323
  %v325 = vsub.f32 %v225, %v324
  %v326 = vmul.f32 %v325, 1.442695
  %v327 = vpow.pop %v326
  %v328 = vrot.slane %v327, 4
  %v329 = vadd.f32 %v327, %v328
  %v330 = vrot.slane %v329, 2
  %v331 = vadd.f32 %v329, %v330
  %v332 = vrot.slane %v331, 1
  %v333 = vadd.f32 %v331, %v332
  %v334 = vlog2.pop %v333
  %v335 = vmul.f32 %v334, 0.6931472
  %v336 = vadd.f32 %v324, %v335
  %v337 = vrot.slane %v228, 4
  %v338 = vmax.f32 %v228, %v337
  %v339 = vrot.slane %v338, 2
  %v340 = vmax.f32 %v338, %v339
  %v341 = vrot.slane %v340, 1
  %v342 = vmax.f32 %v340, %v341
  %v343 = vsub.f32 %v228, %v342
  %v344 = vmul.f32 %v343, 1.442695
  %v345 = vpow.pop %v344
  %v346 = vrot.slane %v345, 4
  %v347 = vadd.f32 %v345, %v346
  %v348 = vrot.slane %v347, 2
  %v349 = vadd.f32 %v347, %v348
  %v350 = vrot.slane %v349, 1
  %v351 = vadd.f32 %v349, %v350
  %v352 = vlog2.pop %v351
  %v353 = vmul.f32 %v352, 0.6931472
  %v354 = vadd.f32 %v342, %v353
  %v355 = vadd.f32 %v336, %v354
  %v356 = vadd.f32 %v355, %v275
  %vm357 = vcmp.eq.s32.totalorder %v237, 2
  %v358 = vsel %vm357, %v356, %v318
  %v359 = vrot.slane %v231, 4
  %v360 = vmax.f32 %v231, %v359
  %v361 = vrot.slane %v360, 2
  %v362 = vmax.f32 %v360, %v361
  %v363 = vrot.slane %v362, 1
  %v364 = vmax.f32 %v362, %v363
  %v365 = vsub.f32 %v231, %v364
  %v366 = vmul.f32 %v365, 1.442695
  %v367 = vpow.pop %v366
  %v368 = vrot.slane %v367, 4
  %v369 = vadd.f32 %v367, %v368
  %v370 = vrot.slane %v369, 2
  %v371 = vadd.f32 %v369, %v370
  %v372 = vrot.slane %v371, 1
  %v373 = vadd.f32 %v371, %v372
  %v374 = vlog2.pop %v373
  %v375 = vmul.f32 %v374, 0.6931472
  %v376 = vadd.f32 %v364, %v375
  %v377 = vrot.slane %v234, 4
  %v378 = vmax.f32 %v234, %v377
  %v379 = vrot.slane %v378, 2
  %v380 = vmax.f32 %v378, %v379
  %v381 = vrot.slane %v380, 1
  %v382 = vmax.f32 %v380, %v381
  %v383 = vsub.f32 %v234, %v382
  %v384 = vmul.f32 %v383, 1.442695
  %v385 = vpow.pop %v384
  %v386 = vrot.slane %v385, 4
  %v387 = vadd.f32 %v385, %v386
  %v388 = vrot.slane %v387, 2
  %v389 = vadd.f32 %v387, %v388
  %v390 = vrot.slane %v389, 1
  %v391 = vadd.f32 %v389, %v390
  %v392 = vlog2.pop %v391
  %v393 = vmul.f32 %v392, 0.6931472
  %v394 = vadd.f32 %v382, %v393
  %v395 = vadd.f32 %v376, %v394
  %v396 = vadd.f32 %v395, %v275
  %vm397 = vcmp.eq.s32.totalorder %v237, 3
  %v398 = vsel %vm397, %v396, %v358
  %vm399 = vcmask 24576
  %400 = vst.msk [vmem:[%s7] sm:$0x1] %vm399, %v398
  // Predicated region
  $region30: #{_mrf_forward_jit.9} parent=0 // pred_check
    _
  $region31: #{_mrf_forward_jit.9} parent=0 // pred_check_branch
    %402 = sbr.rel (0) target = $region33
  $region32: #{_mrf_forward_jit.9} parent=0 // pred_region
    _
  $region33: #{_mrf_forward_jit.9} parent=0 // pred_fallthru
    _
  // Predicated region
  $region34: #{_mrf_forward_jit.9} parent=0 // pred_check
    _
  $region35: #{_mrf_forward_jit.9} parent=0 // pred_check_branch
    %404 = sbr.rel (0) target = $region37
  $region36: #{_mrf_forward_jit.9} parent=0 // pred_region
    _
  $region37: #{_mrf_forward_jit.9} parent=0 // pred_fallthru
    _

</llo_original>
